<compile_context>
chip_gen: v6e
topology: v6e:2x2x1
jax: 0.10.0
libtpu: 0.0.40
codegen_flags: <defaults>
</compile_context>

<pallas_src>
import functools

import jax
import jax.numpy as jnp
from jax import lax
from jax.experimental import pallas as pl
from jax.experimental.pallas import tpu as pltpu

_INV_TEMP = 1.0 / 0.07
_NEG_BIG = -1e30  # masked (padded) key columns: exp(_NEG_BIG - m) == 0 in f32


def _patch_loss_kernel(q_ref, k_neg_ref, k_diag_ref, loss_ref,
                       qhat_ref, out0_ref, m_ref, l_ref, *,
                       tk, b_actual, needs_mask):
    kb = pl.program_id(1)

    @pl.when(kb == 0)
    def _init():
        # Normalize q and fold the 1/0.07 temperature into it (EUP rsqrt) so
        # the MXU emits finished logits.  Runs once per row tile.
        q = q_ref[...].astype(jnp.float32)                             # (TM, D)
        q_inv = lax.rsqrt(jnp.sum(q * q, axis=-1, keepdims=True))
        q_hat = q * (q_inv * jnp.float32(_INV_TEMP))
        # Store q_hat in the MXU dtype: no per-key-step recast later.
        qhat_ref[...] = q_hat.astype(qhat_ref.dtype)
        # Positive (class-0) logit: row-wise dot with the matching, already
        # normalized k row.  Computed once, kept at f32 precision.
        out0_ref[...] = jnp.sum(q_hat * k_diag_ref[...].astype(jnp.float32),
                                axis=-1, keepdims=True)
        m_ref[...] = jnp.full_like(m_ref, -jnp.inf)
        l_ref[...] = jnp.zeros_like(l_ref)

    # NT matmul on the MXU (contract the lane/feature dim of both operands,
    # no explicit k.T through the XLU); bf16 operands by default, f32 acc.
    s = lax.dot_general(qhat_ref[...], k_neg_ref[...],
                        dimension_numbers=(((1,), (1,)), ((), ())),
                        preferred_element_type=jnp.float32)            # (TM, TK)

    if needs_mask:  # static branch: only when B was padded to a multiple of 8
        col = kb * tk + lax.broadcasted_iota(jnp.int32, s.shape, 1)
        s = jnp.where(col < b_actual, s, jnp.float32(_NEG_BIG))

    # Online logsumexp over the key axis.  The accumulators must stay f32:
    # the dropped -10 diagonal replacement relies on exp((-10+1)/0.07)
    # underflowing against terms >= exp(0).
    m_prev = m_ref[...]
    m_new = jnp.maximum(m_prev, jnp.max(s, axis=-1, keepdims=True))
    alpha = jnp.exp(m_prev - m_new)
    l_ref[...] = alpha * l_ref[...] + jnp.sum(jnp.exp(s - m_new),
                                              axis=-1, keepdims=True)
    m_ref[...] = m_new

    @pl.when(kb == pl.num_programs(1) - 1)
    def _finalize():
        # Writeback is only B floats per call; keep the (TM, 1) column store.
        loss_ref[...] = jnp.log(l_ref[...]) + m_ref[...] - out0_ref[...]


def _pick_tile(n, target, mult):
    """Largest multiple of `mult` that divides `n` and is <= target (0 if none)."""
    t = (min(target, n) // mult) * mult
    while t >= mult:
        if n % t == 0:
            return t
        t -= mult
    return 0


def _vmem_estimate(tm, tk, d, q_bytes, k_bytes, qhat_bytes):
    """Rough per-step VMEM footprint: double-buffered operands + scratch +
    headroom for the (tm, tk) f32 logits / exp intermediates."""
    return (2 * tm * d * q_bytes          # q row tile (double-buffered)
            + 2 * tk * d * k_bytes        # k_neg key tile
            + 2 * tm * d * 4              # k_diag (f32) row tile
            + 2 * tm * 4                  # output column
            + tm * d * qhat_bytes         # q_hat scratch (MXU dtype)
            + 3 * tm * 4                  # out0 / m / l scratch
            + 3 * tm * tk * 4)            # s, exp(s) intermediates headroom


def _choose_tiles(bp, d, q_bytes, k_bytes, qhat_bytes, budget_bytes):
    # Row tile: as big as the budget allows (amortizes the K stream), but
    # <= 512 (VMEM-safe on v7x's 64 MiB) and <= bp/2 when possible so the
    # "parallel" row axis actually splits across both v7x TensorCores.
    tm_mult = 16 if bp % 16 == 0 else 8        # bf16 sublane packing
    tm_target = min(512, bp)
    if bp % 2 == 0 and bp // 2 >= tm_mult and bp // 2 < tm_target:
        tm_target = bp // 2
    tm = _pick_tile(bp, tm_target, tm_mult) or _pick_tile(bp, tm_target, 8) or bp

    def pick_tk(tm_):
        # Fully-resident K: constant block index -> K is DMA'd exactly once.
        if _vmem_estimate(tm_, bp, d, q_bytes, k_bytes, qhat_bytes) <= budget_bytes:
            return bp
        # Streamed: lane-friendly widths (multiple of 128) first.
        for target in (1024, 512, 256, 128):
            t = _pick_tile(bp, target, 128)
            if t and _vmem_estimate(tm_, t, d, q_bytes, k_bytes,
                                    qhat_bytes) <= budget_bytes:
                return t
        sub = 16 if bp % 16 == 0 else 8
        for target in (512, 256, 128, 64, 32, 16, 8):
            t = _pick_tile(bp, target, sub)
            if t and _vmem_estimate(tm_, t, d, q_bytes, k_bytes,
                                    qhat_bytes) <= budget_bytes:
                return t
        return 0

    tk = pick_tk(tm)
    while not tk and tm > 8:
        tm = _pick_tile(bp, tm - 8, 8) or 8
        tk = pick_tk(tm)
    if not tk:
        tk = _pick_tile(bp, bp, 8) or bp
    return tm, tk


def patch_loss(feat_q, feat_k, *, tm=None, tk=None, mxu_dtype=jnp.bfloat16,
               vmem_limit_mb=48):
    """loss[i] = CE(concat([cos_ii, cos_row(diag=-10)]) / 0.07, target=0).

    mxu_dtype:     dtype of the MXU operands.  bf16 by default (MXU-native on
                   v5e/v6e/v7x); None selects exact f32 operands.
    vmem_limit_mb: VMEM budget.  48 MiB is safe on every generation (v7x has
                   64 MiB physical); raise toward ~96 MiB on v5e/v6e for
                   bigger row tiles / resident K on large problems.
    """
    b, d = feat_q.shape
    assert feat_k.shape == (b, d), (feat_q.shape, feat_k.shape)
    stream_dtype = jnp.float32 if mxu_dtype is None else mxu_dtype

    # --- One-shot O(B*D) prologue (fused by XLA): L2-normalize K once and
    # stream it in the MXU dtype.  Replaces the per-key-tile rsqrt/scale that
    # was recomputed B/tm times, and halves the dominant HBM stream.
    k32 = feat_k.astype(jnp.float32)
    k_hat32 = k32 * lax.rsqrt(jnp.sum(k32 * k32, axis=-1, keepdims=True))
    k_neg = k_hat32.astype(stream_dtype)

    # --- Pad B up to a multiple of 8 (sublane granularity).  Padded key
    # columns are masked to -1e30 in-kernel; padded rows are sliced off.
    bp = ((b + 7) // 8) * 8
    needs_mask = bp != b
    q_in = feat_q
    if needs_mask:
        pad = ((0, bp - b), (0, 0))
        q_in = jnp.pad(feat_q, pad)
        k_hat32 = jnp.pad(k_hat32, pad)
        k_neg = jnp.pad(k_neg, pad)

    q_bytes = jnp.dtype(q_in.dtype).itemsize
    k_bytes = jnp.dtype(stream_dtype).itemsize
    budget = int(vmem_limit_mb * 1024 * 1024 * 0.75)   # pipeline headroom
    auto_tm, auto_tk = _choose_tiles(bp, d, q_bytes, k_bytes, k_bytes, budget)
    tm = auto_tm if tm is None else tm
    tk = auto_tk if tk is None else tk
    assert bp % tm == 0 and bp % tk == 0, (b, bp, tm, tk)

    # Deeper prefetch on the key stream only when tiles are small and the key
    # sweep is long enough for it to matter; pointless when K is resident.
    k_kwargs = {}
    if tk != bp and (tk * d * k_bytes) < 256 * 1024 and (bp // tk) >= 4:
        k_kwargs["pipeline_mode"] = pl.Buffered(3)
    k_spec = pl.BlockSpec((tk, d), lambda i, kb: (kb, 0), **k_kwargs)

    kernel = functools.partial(_patch_loss_kernel, tk=tk, b_actual=b,
                               needs_mask=needs_mask)

    out = pl.pallas_call(
        kernel,
        out_shape=jax.ShapeDtypeStruct((bp, 1), jnp.float32),
        grid_spec=pltpu.PrefetchScalarGridSpec(
            num_scalar_prefetch=0,
            grid=(bp // tm, bp // tk),
            in_specs=[
                pl.BlockSpec((tm, d), lambda i, kb: (i, 0)),   # q row tile
                k_spec,                                        # normalized K (negatives)
                pl.BlockSpec((tm, d), lambda i, kb: (i, 0)),   # normalized K rows matching q
            ],
            out_specs=pl.BlockSpec((tm, 1), lambda i, kb: (i, 0)),
            scratch_shapes=[
                pltpu.VMEM((tm, d), stream_dtype),  # q_hat (normalized, temp folded)
                pltpu.VMEM((tm, 1), jnp.float32),   # out0 (positive logit, f32)
                pltpu.VMEM((tm, 1), jnp.float32),   # running row max
                pltpu.VMEM((tm, 1), jnp.float32),   # running row sum-of-exp
            ],
        ),
        compiler_params=pltpu.CompilerParams(
            # Row tiles shard across TensorCores (v7x megacore); the key axis
            # is a sequential reduction carried in the scratch accumulators.
            dimension_semantics=("parallel", "arbitrary"),
            vmem_limit_bytes=vmem_limit_mb * 1024 * 1024,
        ),
    )(q_in, k_neg, k_hat32)
    return out[:b, 0]


def patch_loss_ref(feat_q, feat_k):
    # Pure-JAX reference matching the PyTorch module (f32).
    q = feat_q.astype(jnp.float32)
    k = feat_k.astype(jnp.float32)
    bsz = q.shape[0]
    qn = jnp.linalg.norm(q, axis=-1, keepdims=True)
    kn = jnp.linalg.norm(k, axis=-1, keepdims=True)
    cos = (q @ k.T) / (qn * kn.T)
    l_pos = jnp.diagonal(cos)[:, None]
    l_neg = jnp.where(jnp.eye(bsz, dtype=bool), -10.0, cos)
    out = jnp.concatenate([l_pos, l_neg], axis=1) / 0.07
    return jax.nn.logsumexp(out, axis=1) - out[:, 0]


if __name__ == "__main__":
    # 1) Small single-tile case: exact-f32 MXU path (tight tolerance) and the
    #    default bf16 MXU path (documented looser tolerance, f32 accumulation).
    B, D = 8, 32
    kq, kk = jax.random.split(jax.random.PRNGKey(0))
    fq = jax.random.normal(kq, (B, D), dtype=jnp.float32)
    fk = jax.random.normal(kk, (B, D), dtype=jnp.float32)
    ref = patch_loss_ref(fq, fk)
    loss_f32 = jax.block_until_ready(patch_loss(fq, fk, mxu_dtype=None))
    assert loss_f32.shape == (B,)
    assert jnp.allclose(loss_f32, ref, rtol=1e-4, atol=1e-4), (loss_f32, ref)
    loss_bf16 = jax.block_until_ready(patch_loss(fq, fk))
    assert jnp.allclose(loss_bf16, ref, rtol=5e-2, atol=1e-1), (loss_bf16, ref)

    # 2) Multi-tile grid (explicit tm/tk) exercising the online-logsumexp
    #    accumulator across key tiles, bf16 default + exact f32 check.
    B2, D2 = 64, 32
    kq2, kk2 = jax.random.split(jax.random.PRNGKey(1))
    fq2 = jax.random.normal(kq2, (B2, D2), dtype=jnp.float32)
    fk2 = jax.random.normal(kk2, (B2, D2), dtype=jnp.float32)
    ref2 = patch_loss_ref(fq2, fk2)
    loss2 = jax.block_until_ready(patch_loss(fq2, fk2, tm=16, tk=32))
    assert loss2.shape == (B2,)
    assert jnp.allclose(loss2, ref2, rtol=5e-2, atol=1e-1), (loss2, ref2)
    loss2_f32 = jax.block_until_ready(
        patch_loss(fq2, fk2, tm=16, tk=32, mxu_dtype=None))
    assert jnp.allclose(loss2_f32, ref2, rtol=1e-4, atol=1e-4), (loss2_f32, ref2)

    # 3) B not a multiple of 8: padding + masked padded key columns.
    B3, D3 = 10, 32
    kq3, kk3 = jax.random.split(jax.random.PRNGKey(2))
    fq3 = jax.random.normal(kq3, (B3, D3), dtype=jnp.float32)
    fk3 = jax.random.normal(kk3, (B3, D3), dtype=jnp.float32)
    ref3 = patch_loss_ref(fq3, fk3)
    loss3 = jax.block_until_ready(patch_loss(fq3, fk3, mxu_dtype=None))
    assert loss3.shape == (B3,)
    assert jnp.allclose(loss3, ref3, rtol=1e-4, atol=1e-4), (loss3, ref3)

    print("KERNEL_OK")
</pallas_src>

<mosaic_0001>
module attributes {stable_mosaic.version = 11 : i64} {
  func.func @_patch_loss_kernel(%arg0: i32, %arg1: i32, %arg2: memref<8x32xf32, #tpu.memory_space<vmem>>, %arg3: memref<8x32xf32, #tpu.memory_space<vmem>>, %arg4: memref<8x32xf32, #tpu.memory_space<vmem>>, %arg5: memref<8x1xf32, #tpu.memory_space<vmem>>, %arg6: memref<8x32xf32, #tpu.memory_space<vmem>>, %arg7: memref<8x1xf32, #tpu.memory_space<vmem>>, %arg8: memref<8x1xf32, #tpu.memory_space<vmem>>, %arg9: memref<8x1xf32, #tpu.memory_space<vmem>>) attributes {dimension_semantics = [#tpu.dimension_semantics<parallel>, #tpu.dimension_semantics<arbitrary>], iteration_bounds = array<i64: 1, 1>, scalar_prefetch = 0 : i64, scratch_operands = 4 : i64, tpu.core_type = #tpu.core_type<tc>, window_params = [{transform_indices = @transform_0, window_bounds = array<i64: 8, 32>}, {transform_indices = @transform_1, window_bounds = array<i64: 8, 32>}, {transform_indices = @transform_2, window_bounds = array<i64: 8, 32>}, {transform_indices = @transform_3, window_bounds = array<i64: 8, 1>}]} {
    %c0_i32 = arith.constant 0 : i32
    %0 = arith.cmpi eq, %arg1, %c0_i32 : i32
    %1 = arith.extui %0 : i1 to i32
    %c0_i32_0 = arith.constant 0 : i32
    %2 = arith.cmpi ne, %1, %c0_i32_0 : i32
    scf.if %2 {
      %c0_16 = arith.constant 0 : index
      %c0_17 = arith.constant 0 : index
      %25 = vector.load %arg2[%c0_16, %c0_17] : memref<8x32xf32, #tpu.memory_space<vmem>>, vector<8x32xf32>
      %26 = arith.mulf %25, %25 : vector<8x32xf32>
      %cst_18 = arith.constant dense<0.000000e+00> : vector<8xf32>
      %27 = vector.multi_reduction <add>, %26, %cst_18 [1] : vector<8x32xf32> to vector<8xf32>
      %28 = vector.shape_cast %27 : vector<8xf32> to vector<8x1xf32>
      %29 = math.rsqrt %28 : vector<8x1xf32>
      %cst_19 = arith.constant 14.2857141 : f32
      %30 = vector.broadcast %cst_19 : f32 to vector<8x1xf32>
      %31 = arith.mulf %29, %30 : vector<8x1xf32>
      %32 = vector.broadcast %31 : vector<8x1xf32> to vector<8x32xf32>
      %33 = arith.mulf %25, %32 : vector<8x32xf32>
      %c0_20 = arith.constant 0 : index
      %c0_21 = arith.constant 0 : index
      %34 = vector.load %arg6[%c0_20, %c0_21] : memref<8x32xf32, #tpu.memory_space<vmem>>, vector<8x32xf32>
      tpu.vector_store %arg6[%c0_20, %c0_21], %33 {strides = array<i32>} : memref<8x32xf32, #tpu.memory_space<vmem>>, vector<8x32xf32>,
      %c0_22 = arith.constant 0 : index
      %c0_23 = arith.constant 0 : index
      %35 = vector.load %arg4[%c0_22, %c0_23] : memref<8x32xf32, #tpu.memory_space<vmem>>, vector<8x32xf32>
      %36 = arith.mulf %33, %35 : vector<8x32xf32>
      %cst_24 = arith.constant dense<0.000000e+00> : vector<8xf32>
      %37 = vector.multi_reduction <add>, %36, %cst_24 [1] : vector<8x32xf32> to vector<8xf32>
      %38 = vector.shape_cast %37 : vector<8xf32> to vector<8x1xf32>
      %c0_25 = arith.constant 0 : index
      %c0_26 = arith.constant 0 : index
      %39 = vector.load %arg7[%c0_25, %c0_26] : memref<8x1xf32, #tpu.memory_space<vmem>>, vector<8x1xf32>
      tpu.vector_store %arg7[%c0_25, %c0_26], %38 {strides = array<i32>} : memref<8x1xf32, #tpu.memory_space<vmem>>, vector<8x1xf32>,
      %cst_27 = arith.constant 0xFF800000 : f32
      %40 = vector.broadcast %cst_27 : f32 to vector<8x1xf32>
      %c0_28 = arith.constant 0 : index
      %c0_29 = arith.constant 0 : index
      %41 = vector.load %arg8[%c0_28, %c0_29] : memref<8x1xf32, #tpu.memory_space<vmem>>, vector<8x1xf32>
      tpu.vector_store %arg8[%c0_28, %c0_29], %40 {strides = array<i32>} : memref<8x1xf32, #tpu.memory_space<vmem>>, vector<8x1xf32>,
      %cst_30 = arith.constant 0.000000e+00 : f32
      %42 = vector.broadcast %cst_30 : f32 to vector<8x1xf32>
      %c0_31 = arith.constant 0 : index
      %c0_32 = arith.constant 0 : index
      %43 = vector.load %arg9[%c0_31, %c0_32] : memref<8x1xf32, #tpu.memory_space<vmem>>, vector<8x1xf32>
      tpu.vector_store %arg9[%c0_31, %c0_32], %42 {strides = array<i32>} : memref<8x1xf32, #tpu.memory_space<vmem>>, vector<8x1xf32>,
    } else {
    }
    %c0 = arith.constant 0 : index
    %c0_1 = arith.constant 0 : index
    %3 = vector.load %arg6[%c0, %c0_1] : memref<8x32xf32, #tpu.memory_space<vmem>>, vector<8x32xf32>
    %c0_2 = arith.constant 0 : index
    %c0_3 = arith.constant 0 : index
    %4 = vector.load %arg3[%c0_2, %c0_3] : memref<8x32xf32, #tpu.memory_space<vmem>>, vector<8x32xf32>
    %cst = arith.constant dense<0.000000e+00> : vector<8x8xf32>
    %5 = tpu.matmul %3, %4, %cst {dimension_numbers = #tpu.dot_dimension_numbers<[1], [1], [0], [0], [0, 0, 1, 0], [], []>} : vector<8x32xf32>, vector<8x32xf32>, vector<8x8xf32> -> vector<8x8xf32>
    %c0_4 = arith.constant 0 : index
    %c0_5 = arith.constant 0 : index
    %6 = vector.load %arg8[%c0_4, %c0_5] : memref<8x1xf32, #tpu.memory_space<vmem>>, vector<8x1xf32>
    %cst_6 = arith.constant dense<0xFF800000> : vector<8xf32>
    %7 = vector.multi_reduction <maximumf>, %5, %cst_6 [1] : vector<8x8xf32> to vector<8xf32>
    %8 = vector.shape_cast %7 : vector<8xf32> to vector<8x1xf32>
    %9 = arith.maximumf %6, %8 : vector<8x1xf32>
    %10 = arith.subf %6, %9 : vector<8x1xf32>
    %11 = math.exp %10 : vector<8x1xf32>
    %c0_7 = arith.constant 0 : index
    %c0_8 = arith.constant 0 : index
    %12 = vector.load %arg9[%c0_7, %c0_8] : memref<8x1xf32, #tpu.memory_space<vmem>>, vector<8x1xf32>
    %13 = arith.mulf %11, %12 : vector<8x1xf32>
    %14 = vector.broadcast %9 : vector<8x1xf32> to vector<8x8xf32>
    %15 = arith.subf %5, %14 : vector<8x8xf32>
    %16 = math.exp %15 : vector<8x8xf32>
    %cst_9 = arith.constant dense<0.000000e+00> : vector<8xf32>
    %17 = vector.multi_reduction <add>, %16, %cst_9 [1] : vector<8x8xf32> to vector<8xf32>
    %18 = vector.shape_cast %17 : vector<8xf32> to vector<8x1xf32>
    %19 = arith.addf %13, %18 : vector<8x1xf32>
    %c0_10 = arith.constant 0 : index
    %c0_11 = arith.constant 0 : index
    %20 = vector.load %arg9[%c0_10, %c0_11] : memref<8x1xf32, #tpu.memory_space<vmem>>, vector<8x1xf32>
    tpu.vector_store %arg9[%c0_10, %c0_11], %19 {strides = array<i32>} : memref<8x1xf32, #tpu.memory_space<vmem>>, vector<8x1xf32>,
    %c0_12 = arith.constant 0 : index
    %c0_13 = arith.constant 0 : index
    %21 = vector.load %arg8[%c0_12, %c0_13] : memref<8x1xf32, #tpu.memory_space<vmem>>, vector<8x1xf32>
    tpu.vector_store %arg8[%c0_12, %c0_13], %9 {strides = array<i32>} : memref<8x1xf32, #tpu.memory_space<vmem>>, vector<8x1xf32>,
    %c0_i32_14 = arith.constant 0 : i32
    %22 = arith.cmpi eq, %arg1, %c0_i32_14 : i32
    %23 = arith.extui %22 : i1 to i32
    %c0_i32_15 = arith.constant 0 : i32
    %24 = arith.cmpi ne, %23, %c0_i32_15 : i32
    scf.if %24 {
      %c0_16 = arith.constant 0 : index
      %c0_17 = arith.constant 0 : index
      %25 = vector.load %arg9[%c0_16, %c0_17] : memref<8x1xf32, #tpu.memory_space<vmem>>, vector<8x1xf32>
      %26 = math.log %25 : vector<8x1xf32>
      %c0_18 = arith.constant 0 : index
      %c0_19 = arith.constant 0 : index
      %27 = vector.load %arg8[%c0_18, %c0_19] : memref<8x1xf32, #tpu.memory_space<vmem>>, vector<8x1xf32>
      %28 = arith.addf %26, %27 : vector<8x1xf32>
      %c0_20 = arith.constant 0 : index
      %c0_21 = arith.constant 0 : index
      %29 = vector.load %arg7[%c0_20, %c0_21] : memref<8x1xf32, #tpu.memory_space<vmem>>, vector<8x1xf32>
      %30 = arith.subf %28, %29 : vector<8x1xf32>
      %c0_22 = arith.constant 0 : index
      %c0_23 = arith.constant 0 : index
      %31 = vector.load %arg5[%c0_22, %c0_23] : memref<8x1xf32, #tpu.memory_space<vmem>>, vector<8x1xf32>
      tpu.vector_store %arg5[%c0_22, %c0_23], %30 {strides = array<i32>} : memref<8x1xf32, #tpu.memory_space<vmem>>, vector<8x1xf32>,
    } else {
    }
    return
  }
  func.func @transform_0(%arg0: i32, %arg1: i32) -> (i32, i32) {
    %c0_i32 = arith.constant 0 : i32
    %c0_i32_0 = arith.constant 0 : i32
    return %arg0, %c0_i32 : i32, i32
  }
  func.func @transform_1(%arg0: i32, %arg1: i32) -> (i32, i32) {
    %c0_i32 = arith.constant 0 : i32
    %c0_i32_0 = arith.constant 0 : i32
    return %arg1, %c0_i32 : i32, i32
  }
  func.func @transform_2(%arg0: i32, %arg1: i32) -> (i32, i32) {
    %c0_i32 = arith.constant 0 : i32
    %c0_i32_0 = arith.constant 0 : i32
    return %arg0, %c0_i32 : i32, i32
  }
  func.func @transform_3(%arg0: i32, %arg1: i32) -> (i32, i32) {
    %c0_i32 = arith.constant 0 : i32
    %c0_i32_0 = arith.constant 0 : i32
    return %arg0, %c0_i32 : i32, i32
  }
}

</mosaic_0001>

<llo_original>
// kernel: tpu_custom_call.1
$region0: #{tpu_custom_call.1}
  #allocation0 [shape = 'u32[]', space=smem, size = 0x4, offset = 0x4, fixed_abs, tag = 'smem constant byte address 0x4 - core index']
  #allocation1 [shape = 'u32[144,128]{1,0:T(1,128)}', space=vmem, size = 0x12000, scoped, tag = 'internal scratch']
  #allocation2 [shape = 'f32[8,32]{1,0:T(8,128)}', space=vmem, size = 0x1000, scoped, tag = 'scratch operand']
  #allocation3 [shape = 'f32[8,1]{1,0:T(8,128)}', space=vmem, size = 0x1000, scoped, tag = 'scratch operand']
  #allocation4 [shape = 'f32[8,1]{1,0:T(8,128)}', space=vmem, size = 0x1000, scoped, tag = 'scratch operand']
  #allocation5 [shape = 'f32[8,1]{1,0:T(8,128)}', space=vmem, size = 0x1000, scoped, tag = 'scratch operand']
  %s0 = inlined_call_operand.hbm [shape: f32[8,32], index: 0, kind: input, shape index: {}]
  %s1 = inlined_call_operand.hbm [shape: f32[8,32], index: 1, kind: input, shape index: {}]
  %s2 = inlined_call_operand.hbm [shape: f32[8,32], index: 2, kind: input, shape index: {}]
  %s3 = inlined_call_operand.vmem [shape: f32[8,1], index: 3, kind: output, shape index: {}]
  %s4 = sld [smem:[#allocation0]]
  $region42: #{tpu_custom_call.1} parent=0
    _
  %s6 = ssub.s32 1, %s4
  %s7 = scalar_select 0, %s6, %s4
  $region1: #{tpu_custom_call.1} parent=0
    #allocation6 [shape = 'u8[4096]{0}', space=vmem, size = 0x1000, scoped, tag = 'input window, operand 0, single buffered']
    #allocation7 [shape = 's32[1]{0}', space=sflag, size = 0x4, scoped, tag = 'scoped memory for tpu_custom_call.1']
    #allocation8 [shape = 'u8[4096]{0}', space=vmem, size = 0x1000, scoped, tag = 'input window, operand 1, single buffered']
    #allocation9 [shape = 's32[1]{0}', space=sflag, size = 0x4, scoped, tag = 'scoped memory for tpu_custom_call.1']
    #allocation10 [shape = 'u8[4096]{0}', space=vmem, size = 0x1000, scoped, tag = 'input window, operand 2, single buffered']
    %8 = vsyncpa [#allocation7], 0
    %9 = vsyncpa [#allocation9], 0
    // Predicated region
    $region2: #{tpu_custom_call.1} parent=1 // pred_check
      _
    $region3: #{tpu_custom_call.1} parent=1 // pred_check_branch
      %11 = sbr.rel (0) target = $region5
    $region4: #{tpu_custom_call.1} parent=1 // pred_region
      %s13 = ssub.s32 128, 128
      %14 = vsyncadd [#allocation7], %s13
      %s16 = sshll.u32 [#allocation6], 4
      %s17 = int_to_ptr.vmem [resolvable:$true] %s16
      %19 = dma.hbm_to_vmem [thread:$0]  %s0, 128, %s17, [#allocation7]
    $region5: #{tpu_custom_call.1} parent=1 // pred_fallthru
      _
    // Predicated region
    $region6: #{tpu_custom_call.1} parent=1 // pred_check
      _
    $region7: #{tpu_custom_call.1} parent=1 // pred_check_branch
      %21 = sbr.rel (0) target = $region9
    $region8: #{tpu_custom_call.1} parent=1 // pred_region
      %s23 = ssub.s32 128, 128
      %24 = vsyncadd [#allocation9], %s23
      %s26 = sshll.u32 [#allocation8], 4
      %s27 = int_to_ptr.vmem [resolvable:$true] %s26
      %29 = dma.hbm_to_vmem [thread:$0]  %s1, 128, %s27, [#allocation9]
    $region9: #{tpu_custom_call.1} parent=1 // pred_fallthru
      _
    // Predicated region
    $region10: #{tpu_custom_call.1} parent=1 // pred_check
      _
    $region11: #{tpu_custom_call.1} parent=1 // pred_check_branch
      %31 = sbr.rel (0) target = $region13
    $region12: #{tpu_custom_call.1} parent=1 // pred_region
      %s33 = ssub.s32 128, 128
      %34 = vsyncadd [#allocation9], %s33
      %s36 = sshll.u32 [#allocation10], 4
      %s37 = int_to_ptr.vmem [resolvable:$true] %s36
      %39 = dma.hbm_to_vmem [thread:$0]  %s2, 128, %s37, [#allocation9]
    $region13: #{tpu_custom_call.1} parent=1 // pred_fallthru
      _
    // Predicated region
    $region14: #{tpu_custom_call.1} parent=1 // pred_check
      _
    $region15: #{tpu_custom_call.1} parent=1 // pred_check_branch
      %41 = sbr.rel (0) target = $region17
    $region16: #{tpu_custom_call.1} parent=1 // pred_region
      %42 = dma.done [#allocation7], 128
    $region17: #{tpu_custom_call.1} parent=1 // pred_fallthru
      _
    // Predicated region
    $region18: #{tpu_custom_call.1} parent=1 // pred_check
      _
    $region19: #{tpu_custom_call.1} parent=1 // pred_check_branch
      %44 = sbr.rel (0) target = $region21
    $region20: #{tpu_custom_call.1} parent=1 // pred_region
      %45 = dma.done [#allocation9], 128
    $region21: #{tpu_custom_call.1} parent=1 // pred_fallthru
      _
    // Predicated region
    $region22: #{tpu_custom_call.1} parent=1 // pred_check
      _
    $region23: #{tpu_custom_call.1} parent=1 // pred_check_branch
      %47 = sbr.rel (0) target = $region25
    $region24: #{tpu_custom_call.1} parent=1 // pred_region
      %48 = dma.done [#allocation9], 128
    $region25: #{tpu_custom_call.1} parent=1 // pred_fallthru
      _
    %p49 = scmp.eq.s32.totalorder 0, 0
    // Predicated region
    $region26: #{tpu_custom_call.1} parent=1 // pred_check
      %p50 = pneg %p49
    $region27: #{tpu_custom_call.1} parent=1 // pred_check_branch
      %52 = sbr.rel (%p50) target = $region29
    $region28: #{tpu_custom_call.1} parent=1 // pred_region
      %v53 = vld [vmem:[#allocation6] sm:$0xff]
      %v54 = vmul.f32 %v53, %v53
      %vm55 = vcmask 261120
      %v56 = vsel %vm55, %v54, 0.0
      %57 = vadd.xlane.f32.xlu0 %v56
      %v58 = vpop.xlane.xlu0 %57
      %v59 = vrsqrt.pop %v58
      %v60 = vmul.f32 %v59, 14.285714
      %v61 = vmul.f32 %v53, %v60
      %62 = vst.msk [vmem:[#allocation2] sm:$0xff] %vm55, %v61
      %v63 = vld [vmem:[#allocation10] sm:$0xff]
      %v64 = vmul.f32 %v61, %v63
      %v65 = vsel %vm55, %v64, 0.0
      %66 = vadd.xlane.f32.xlu0 %v65
      %v67 = vpop.xlane.xlu0 %66
      %vm68 = vcmask 7168
      %69 = vst.msk [vmem:[#allocation3] sm:$0xff] %vm68, %v67
      %70 = vst.msk [vmem:[#allocation4] sm:$0xff] %vm68, -inf
      %71 = vst.msk [vmem:[#allocation5] sm:$0xff] %vm68, 0.0
    $region29: #{tpu_custom_call.1} parent=1 // pred_fallthru
      _
    %v72 = vld [vmem:[#allocation2] sm:$0xff]
    %v73 = vld [vmem:[#allocation8] sm:$0xff]
    %vm74 = vcmask 261120
    %v76 = vsel %vm74, %v72, 0
    %v79 = vsel %vm74, %v73, 0
    %81 = vmatprep.subr.mxu0 0.0
    %82 = vmatpush1.xpose.msra.mxu0 0.0
    %83 = vmatprep.subr.mxu0 0.0
    %84 = vmatpush1.xpose.msra.mxu0 0.0
    %85 = vmatprep.subr.mxu0 0.0
    %86 = vmatpush1.xpose.msra.mxu0 0.0
    %87 = vmatprep.subr.mxu0 0.0
    %88 = vmatpush1.xpose.msra.mxu0 0.0
    %89 = vmatprep.subr.mxu0 0.0
    %90 = vmatpush1.xpose.msra.mxu0 0.0
    %91 = vmatprep.subr.mxu0 0.0
    %92 = vmatpush1.xpose.msra.mxu0 0.0
    %93 = vmatprep.subr.mxu0 0.0
    %94 = vmatpush1.xpose.msra.mxu0 0.0
    %95 = vmatprep.subr.mxu0 0.0
    %96 = vmatpush1.xpose.msra.mxu0 0.0
    %97 = vmatprep.subr.mxu0 0.0
    %98 = vmatpush1.xpose.msra.mxu0 0.0
    %99 = vmatprep.subr.mxu0 0.0
    %100 = vmatpush1.xpose.msra.mxu0 0.0
    %101 = vmatprep.subr.mxu0 0.0
    %102 = vmatpush1.xpose.msra.mxu0 0.0
    %103 = vmatprep.subr.mxu0 0.0
    %104 = vmatpush1.xpose.msra.mxu0 0.0
    %105 = vmatprep.subr.mxu0 0.0
    %106 = vmatpush1.xpose.msra.mxu0 0.0
    %107 = vmatprep.subr.mxu0 0.0
    %108 = vmatpush1.xpose.msra.mxu0 0.0
    %109 = vmatprep.subr.mxu0 0.0
    %110 = vmatpush1.xpose.msra.mxu0 0.0
    %111 = vmatprep.subr.mxu0 0.0
    %112 = vmatpush1.xpose.msra.mxu0 %v79
    %113 = vmatprep.subr.mxu0 0.0
    %114 = vmatpush2.xpose.msra.mxu0 0.0
    %115 = vmatprep.subr.mxu0 0.0
    %116 = vmatpush2.xpose.msra.mxu0 0.0
    %117 = vmatprep.subr.mxu0 0.0
    %118 = vmatpush2.xpose.msra.mxu0 0.0
    %119 = vmatprep.subr.mxu0 0.0
    %120 = vmatpush2.xpose.msra.mxu0 0.0
    %121 = vmatprep.subr.mxu0 0.0
    %122 = vmatpush2.xpose.msra.mxu0 0.0
    %123 = vmatprep.subr.mxu0 0.0
    %124 = vmatpush2.xpose.msra.mxu0 0.0
    %125 = vmatprep.subr.mxu0 0.0
    %126 = vmatpush2.xpose.msra.mxu0 0.0
    %127 = vmatprep.subr.mxu0 0.0
    %128 = vmatpush2.xpose.msra.mxu0 0.0
    %129 = vmatprep.subr.mxu0 0.0
    %130 = vmatpush2.xpose.msra.mxu0 0.0
    %131 = vmatprep.subr.mxu0 0.0
    %132 = vmatpush2.xpose.msra.mxu0 0.0
    %133 = vmatprep.subr.mxu0 0.0
    %134 = vmatpush2.xpose.msra.mxu0 0.0
    %135 = vmatprep.subr.mxu0 0.0
    %136 = vmatpush2.xpose.msra.mxu0 0.0
    %137 = vmatprep.subr.mxu0 0.0
    %138 = vmatpush2.xpose.msra.mxu0 0.0
    %139 = vmatprep.subr.mxu0 0.0
    %140 = vmatpush2.xpose.msra.mxu0 0.0
    %141 = vmatprep.subr.mxu0 0.0
    %142 = vmatpush2.xpose.msra.mxu0 0.0
    %143 = vmatprep.subr.mxu0 0.0
    %144 = vmatpush2.xpose.msra.mxu0 0.0
    %145 = vmatprep.mubr.f32.mxu0 0.0
    %146 = vmatmul.mubr.f32.gmra.mxu0 %v76
    %v147 = vpop.f32.mrf.mxu0
    %v148 = vadd.f32 0.0, %v147
    %v149 = vpop.f32.mrf.mxu0
    %150 = vdwg.mxu0
    %v151 = vld [vmem:[#allocation4] sm:$0xff]
    %vm152 = vcmask 64512
    %v153 = vsel %vm152, %v148, -inf
    %154 = vmax.xlane.f32.xlu0 %v153
    %v155 = vpop.xlane.xlu0 %154
    %v156 = vmax.f32 %v151, %v155
    %v157 = vsub.f32 %v151, %v156
    %v158 = vmul.f32 %v157, 1.442695
    %v159 = vpow.pop %v158
    %v160 = vld [vmem:[#allocation5] sm:$0xff]
    %v161 = vmul.f32 %v159, %v160
    %163 = vset.pattern.permute.xlu0 0
    %164 = vperm.xlu0 %163, %v156
    %v165 = vpop.permute.xlu0 %164
    %v167 = vsub.f32 %v148, %v165
    %v168 = vmul.f32 %v167, 1.442695
    %v169 = vpow.pop %v168
    %v170 = vsel %vm152, %v169, 0.0
    %171 = vadd.xlane.f32.xlu0 %v170
    %v172 = vpop.xlane.xlu0 %171
    %v173 = vadd.f32 %v161, %v172
    %vm174 = vcmask 7168
    %175 = vst.msk [vmem:[#allocation5] sm:$0xff] %vm174, %v173
    %176 = vst.msk [vmem:[#allocation4] sm:$0xff] %vm174, %v156
    // Predicated region
    $region30: #{tpu_custom_call.1} parent=1 // pred_check
      %p177 = pneg %p49
    $region31: #{tpu_custom_call.1} parent=1 // pred_check_branch
      %179 = sbr.rel (%p177) target = $region33
    $region32: #{tpu_custom_call.1} parent=1 // pred_region
      %v180 = vld [vmem:[#allocation5] sm:$0xff]
      %v181 = vlog2.pop %v180
      %v182 = vmul.f32 %v181, 0.6931472
      %v183 = vld [vmem:[#allocation4] sm:$0xff]
      %v184 = vadd.f32 %v182, %v183
      %v185 = vld [vmem:[#allocation3] sm:$0xff]
      %v186 = vsub.f32 %v184, %v185
      %187 = vst.msk [vmem:[%s3] sm:$0xff] %vm174, %v186
    $region33: #{tpu_custom_call.1} parent=1 // pred_fallthru
      _
    // Predicated region
    $region34: #{tpu_custom_call.1} parent=1 // pred_check
      _
    $region35: #{tpu_custom_call.1} parent=1 // pred_check_branch
      %189 = sbr.rel (0) target = $region37
    $region36: #{tpu_custom_call.1} parent=1 // pred_region
      _
    $region37: #{tpu_custom_call.1} parent=1 // pred_fallthru
      _
    // Predicated region
    $region38: #{tpu_custom_call.1} parent=1 // pred_check
      _
    $region39: #{tpu_custom_call.1} parent=1 // pred_check_branch
      %191 = sbr.rel (0) target = $region41
    $region40: #{tpu_custom_call.1} parent=1 // pred_region
      _
    $region41: #{tpu_custom_call.1} parent=1 // pred_fallthru
      _
    %192 = vsyncpa [#allocation7], 1
    %193 = vsyncpa [#allocation9], 1

</llo_original>
